<compile_context>
chip_gen: v5e
topology: v5e:2x2
jax: 0.10.0
libtpu: 0.0.40
codegen_flags: <defaults>
</compile_context>

<pallas_src>
import math

import jax
import jax.numpy as jnp
from jax.experimental import pallas as pl
from jax.experimental.pallas import tpu as pltpu


_TARGET_BLOCK_BYTES = 1 << 20   # ~1 MiB blocks (native dtype) per grid step.


def _rope_kernel(cos_ref, sin_ref, x_ref, o_ref):
    """Rotate one (rows, Dp) slab. cos/sin are f32 tables matching the block
    rows; sin already carries the even-lane minus sign."""
    x = x_ref[...].astype(jnp.float32)            # up-cast only in registers
    dp = x.shape[-1]
    # lane i of x_p holds x[i+1]; lane i of x_m holds x[i-1]. The circular
    # wrap-around lanes (0 and dp-1) are masked out by the even/odd select.
    x_p = pltpu.roll(x, shift=dp - 1, axis=1)
    x_m = pltpu.roll(x, shift=1, axis=1)
    lane = jax.lax.broadcasted_iota(jnp.int32, x.shape, dimension=1)
    x_rot = jnp.where((lane % 2) == 0, x_p, x_m)  # [x1, x0, x3, x2, ...]
    # out[2m]   = cos*x[2m]   - sin*x[2m+1]   (minus folded into sin table)
    # out[2m+1] = cos*x[2m+1] + sin*x[2m]
    o_ref[...] = (cos_ref[...] * x + sin_ref[...] * x_rot).astype(o_ref.dtype)


def _choose_block_rows(bh, lp, dp, itemsize):
    """Pick rows-per-grid-step for the flattened (bh*lp, dp) view.

    Returns (t_r, mode): mode == "slab" -> blocks are k whole (batch*head)
    sequences (cos table pre-tiled to t_r rows, constant index_map);
    mode == "seq" -> blocks tile inside one sequence (t_r divides lp,
    modular index_map into the (lp, dp) table)."""
    rows_total = bh * lp
    row_bytes = dp * itemsize
    target_rows = max(8, _TARGET_BLOCK_BYTES // row_bytes)

    if lp <= target_rows:
        k = int(min(bh, target_rows // lp))
        if bh > 1 and bh // k < 2:        # keep >=2 grid steps (v7x: 2 TCs)
            k = max(1, bh // 2)
        while k > 1 and (bh % k != 0 or (k * lp) % 8 != 0):
            k -= 1
        t_r = k * lp
        if t_r % 8 != 0 and t_r != rows_total:   # rare: lp not a multiple of 8
            t_r = rows_total                     # -> single (legal) block
        return t_r, "slab"

    # Long sequence: tile within it using a multiple-of-8 divisor of lp.
    t_r = lp
    while t_r % 2 == 0 and (t_r // 2) % 8 == 0 and t_r > target_rows:
        t_r //= 2
    if t_r % 8 != 0 and t_r != rows_total:       # rare fallback: one legal block
        return rows_total, "slab"
    return t_r, "seq"


def rotary_embedding(x, theta=10000.0):
    """Apply interleaved RoPE to x of shape (..., L, D); matches the torch module."""
    *lead, L, D = x.shape
    assert D % 2 == 0
    bh = math.prod(lead) if lead else 1

    # ---- host-side "parameter" setup (mirrors __init__/get_freqs) ------------
    # TODO(synk): the module's python-dict freq cache has no kernel equivalent;
    # the tables are rebuilt here (cheap, and cached by jit if the caller jits).
    pos = jnp.arange(L, dtype=jnp.float32)
    inv_freq = theta ** (-jnp.arange(0, D, 2, dtype=jnp.float32) / D)   # (D/2,)
    ang = pos[:, None] * inv_freq[None, :]                              # (L, D/2)
    cos = jnp.repeat(jnp.cos(ang), 2, axis=-1)                          # c0 c0 c1 c1 ...
    sin = jnp.repeat(jnp.sin(ang), 2, axis=-1)                          # s0 s0 s1 s1 ...
    sign = jnp.tile(jnp.asarray([-1.0, 1.0], jnp.float32), D // 2)      # fold the even-lane
    sin = sin * sign                                                    # negation into sin

    # ---- lane packing: fold S consecutive seq positions into one >=128-lane row.
    # (..., L, D) -> (bh*L/S, S*D) is a pure contiguous reshape: no HBM copy.
    S = 1
    if D < 128 and 128 % D == 0 and L % (128 // D) == 0:
        S = 128 // D
    Lp, Dp = L // S, D * S
    rows = bh * Lp
    x2 = x.reshape(rows, Dp)                    # native dtype, no cast
    cos = cos.reshape(Lp, Dp)
    sin = sin.reshape(Lp, Dp)

    t_r, mode = _choose_block_rows(bh, Lp, Dp, jnp.dtype(x.dtype).itemsize)
    if mode == "slab":
        reps = t_r // Lp
        cos_tbl = jnp.tile(cos, (reps, 1))      # (t_r, Dp): fetched once, stays in VMEM
        sin_tbl = jnp.tile(sin, (reps, 1))
        tbl_map = lambda i: (0, 0)
    else:
        n_seq = Lp // t_r
        cos_tbl, sin_tbl = cos, sin             # (Lp, Dp)
        tbl_map = lambda i: (i % n_seq, 0)

    out = pl.pallas_call(
        _rope_kernel,
        out_shape=jax.ShapeDtypeStruct((rows, Dp), x.dtype),
        grid_spec=pltpu.PrefetchScalarGridSpec(
            num_scalar_prefetch=0,
            grid=(rows // t_r,),
            in_specs=[
                pl.BlockSpec((t_r, Dp), tbl_map),           # cos (f32)
                pl.BlockSpec((t_r, Dp), tbl_map),           # sin (f32, sign-folded)
                pl.BlockSpec((t_r, Dp), lambda i: (i, 0)),  # x block (native dtype)
            ],
            out_specs=pl.BlockSpec((t_r, Dp), lambda i: (i, 0)),
        ),
        compiler_params=pltpu.CompilerParams(
            dimension_semantics=("parallel",)),
    )(cos_tbl, sin_tbl, x2)
    return out.reshape(x.shape)


def _rope_reference(x, theta=10000.0):
    """Pure-JAX reference mirroring the torch forward exactly (f32 math)."""
    *lead, L, D = x.shape
    pos = jnp.arange(L, dtype=jnp.float32)
    inv_freq = theta ** (-jnp.arange(0, D, 2, dtype=jnp.float32) / D)
    ang = pos[:, None] * inv_freq[None, :]
    cos, sin = jnp.cos(ang), jnp.sin(ang)
    xp = x.astype(jnp.float32).reshape(*lead, L, D // 2, 2)
    x0, x1 = xp[..., 0], xp[..., 1]
    o0 = cos * x0 - sin * x1
    o1 = sin * x0 + cos * x1
    return jnp.stack([o0, o1], axis=-1).reshape(*lead, L, D)


if __name__ == "__main__":
    key = jax.random.PRNGKey(0)
    B, H, L, D = 2, 4, 16, 64          # (batch, heads, seq len, head dim)
    x = jax.random.normal(key, (B, H, L, D), dtype=jnp.float32)

    out = jax.block_until_ready(rotary_embedding(x))
    ref = _rope_reference(x)
    assert out.shape == x.shape and out.dtype == x.dtype
    assert jnp.allclose(out, ref, atol=1e-5, rtol=1e-5), "f32 mismatch vs reference"

    # bf16 path: native dtype in HBM, f32 math only inside the kernel.
    xb = x.astype(jnp.bfloat16)
    outb = jax.block_until_ready(rotary_embedding(xb))
    refb = _rope_reference(xb)
    assert outb.dtype == jnp.bfloat16 and outb.shape == xb.shape
    assert jnp.allclose(outb.astype(jnp.float32), refb, atol=2e-2, rtol=2e-2), \
        "bf16 mismatch vs reference"

    print("KERNEL_OK")
</pallas_src>

<mosaic_0001>
module attributes {stable_mosaic.version = 11 : i64} {
  func.func @_rope_kernel(%arg0: i32, %arg1: memref<32x128xf32, #tpu.memory_space<vmem>>, %arg2: memref<32x128xf32, #tpu.memory_space<vmem>>, %arg3: memref<32x128xf32, #tpu.memory_space<vmem>>, %arg4: memref<32x128xf32, #tpu.memory_space<vmem>>) attributes {dimension_semantics = [#tpu.dimension_semantics<parallel>], iteration_bounds = array<i64: 2>, scalar_prefetch = 0 : i64, scratch_operands = 0 : i64, tpu.core_type = #tpu.core_type<tc>, window_params = [{pipeline_mode = #tpu.pipeline_mode<synchronous>, transform_indices = @transform_0, window_bounds = array<i64: 32, 128>}, {pipeline_mode = #tpu.pipeline_mode<synchronous>, transform_indices = @transform_1, window_bounds = array<i64: 32, 128>}, {transform_indices = @transform_2, window_bounds = array<i64: 32, 128>}, {transform_indices = @transform_3, window_bounds = array<i64: 32, 128>}]} {
    %c0 = arith.constant 0 : index
    %c0_0 = arith.constant 0 : index
    %0 = vector.load %arg3[%c0, %c0_0] : memref<32x128xf32, #tpu.memory_space<vmem>>, vector<32x128xf32>
    %c127_i32 = arith.constant 127 : i32
    %1 = tpu.dynamic_rotate %0 by %c127_i32 dim 1 : vector<32x128xf32>, i32 -> vector<32x128xf32>
    %c1_i32 = arith.constant 1 : i32
    %2 = tpu.dynamic_rotate %0 by %c1_i32 dim 1 : vector<32x128xf32>, i32 -> vector<32x128xf32>
    %3 = tpu.iota {dimensions = array<i32: 1>} : vector<32x128xi32>
    %c2_i32 = arith.constant 2 : i32
    %c0_i32 = arith.constant 0 : i32
    %4 = arith.cmpi eq, %c2_i32, %c0_i32 : i32
    %c1_i32_1 = arith.constant 1 : i32
    %5 = arith.select %4, %c1_i32_1, %c2_i32 : i32
    %6 = vector.broadcast %5 : i32 to vector<32x128xi32>
    %7 = arith.remsi %3, %6 : vector<32x128xi32>
    %c0_i32_2 = arith.constant 0 : i32
    %8 = vector.broadcast %c0_i32_2 : i32 to vector<32x128xi32>
    %9 = arith.cmpi ne, %7, %8 : vector<32x128xi32>
    %c0_i32_3 = arith.constant 0 : i32
    %10 = vector.broadcast %c0_i32_3 : i32 to vector<32x128xi32>
    %11 = arith.cmpi slt, %7, %10 : vector<32x128xi32>
    %c0_i32_4 = arith.constant 0 : i32
    %12 = arith.cmpi slt, %5, %c0_i32_4 : i32
    %13 = vector.broadcast %12 : i1 to vector<32x128xi1>
    %14 = vector.broadcast %13 : vector<32x128xi1> to vector<32x128xi1>
    %15 = arith.xori %11, %14 : vector<32x128xi1>
    %16 = arith.andi %15, %9 : vector<32x128xi1>
    %17 = vector.broadcast %5 : i32 to vector<32x128xi32>
    %18 = arith.addi %7, %17 : vector<32x128xi32>
    %19 = arith.select %16, %18, %7 : vector<32x128xi1>, vector<32x128xi32>
    %c0_i32_5 = arith.constant 0 : i32
    %20 = vector.broadcast %c0_i32_5 : i32 to vector<32x128xi32>
    %21 = arith.cmpi eq, %19, %20 : vector<32x128xi32>
    %22 = arith.select %21, %1, %2 : vector<32x128xi1>, vector<32x128xf32>
    %c0_6 = arith.constant 0 : index
    %c0_7 = arith.constant 0 : index
    %23 = vector.load %arg1[%c0_6, %c0_7] : memref<32x128xf32, #tpu.memory_space<vmem>>, vector<32x128xf32>
    %24 = arith.mulf %23, %0 : vector<32x128xf32>
    %c0_8 = arith.constant 0 : index
    %c0_9 = arith.constant 0 : index
    %25 = vector.load %arg2[%c0_8, %c0_9] : memref<32x128xf32, #tpu.memory_space<vmem>>, vector<32x128xf32>
    %26 = arith.mulf %25, %22 : vector<32x128xf32>
    %27 = arith.addf %24, %26 : vector<32x128xf32>
    %c0_10 = arith.constant 0 : index
    %c0_11 = arith.constant 0 : index
    %28 = vector.load %arg4[%c0_10, %c0_11] : memref<32x128xf32, #tpu.memory_space<vmem>>, vector<32x128xf32>
    tpu.vector_store %arg4[%c0_10, %c0_11], %27 {strides = array<i32>} : memref<32x128xf32, #tpu.memory_space<vmem>>, vector<32x128xf32>,
    return
  }
  func.func @transform_0(%arg0: i32) -> (i32, i32) {
    %c0_i32 = arith.constant 0 : i32
    %c0_i32_0 = arith.constant 0 : i32
    %c0_i32_1 = arith.constant 0 : i32
    return %c0_i32, %c0_i32_0 : i32, i32
  }
  func.func @transform_1(%arg0: i32) -> (i32, i32) {
    %c0_i32 = arith.constant 0 : i32
    %c0_i32_0 = arith.constant 0 : i32
    %c0_i32_1 = arith.constant 0 : i32
    return %c0_i32, %c0_i32_0 : i32, i32
  }
  func.func @transform_2(%arg0: i32) -> (i32, i32) {
    %c0_i32 = arith.constant 0 : i32
    %c0_i32_0 = arith.constant 0 : i32
    return %arg0, %c0_i32 : i32, i32
  }
  func.func @transform_3(%arg0: i32) -> (i32, i32) {
    %c0_i32 = arith.constant 0 : i32
    %c0_i32_0 = arith.constant 0 : i32
    return %arg0, %c0_i32 : i32, i32
  }
}

</mosaic_0001>

<llo_original>
// kernel: tpu_custom_call.1
$region0: #{tpu_custom_call.1}
  #allocation0 [shape = 'u32[]', space=smem, size = 0x4, offset = 0x4, fixed_abs, tag = 'smem constant byte address 0x4 - core index']
  #allocation1 [shape = 'u32[72,128]{1,0:T(1,128)}', space=vmem, size = 0x9000, scoped, tag = 'internal scratch']
  %s0 = inlined_call_operand.hbm [shape: f32[32,128], index: 0, kind: input, shape index: {}]
  %s1 = inlined_call_operand.hbm [shape: f32[32,128], index: 1, kind: input, shape index: {}]
  %s2 = inlined_call_operand.hbm [shape: f32[64,128], index: 2, kind: input, shape index: {}]
  %s3 = inlined_call_operand.hbm [shape: f32[64,128], index: 3, kind: output, shape index: {}]
  %s4 = sld [smem:[#allocation0]]
  $region57: #{tpu_custom_call.1} parent=0
    _
  %s6 = ssub.s32 1, %s4
  %s7 = scalar_select 0, %s6, %s4
  $region1: #{tpu_custom_call.1} parent=0
    #allocation2 [shape = 'u8[16384]{0}', space=vmem, size = 0x4000, scoped, tag = 'input window, operand 0, single buffered']
    #allocation3 [shape = 's32[2]{0}', space=sflag, size = 0x8, scoped, tag = 'scoped memory for tpu_custom_call.1']
    #allocation4 [shape = 's32[2]{0}', space=sflag, size = 0x8, scoped, tag = 'scoped memory for tpu_custom_call.1']
    #allocation5 [shape = 'u8[16384]{0}', space=vmem, size = 0x4000, scoped, tag = 'input window, operand 1, single buffered']
    #allocation6 [shape = 's32[1]{0}', space=sflag, size = 0x4, scoped, tag = 'scoped memory for tpu_custom_call.1']
    #allocation7 [shape = 'u8[32768]{0}', space=vmem, size = 0x8000, scoped, tag = 'input window, operand 2']
    #allocation8 [shape = 'u8[32768]{0}', space=vmem, size = 0x8000, scoped, tag = 'output window, operand 0']
    %8 = vsyncpa [#allocation3], 0
    %9 = vsyncpa [#allocation6], 0
    %10 = vsyncpa [#allocation4], 0
    %s11 = scalar_lea.sflag [#allocation4], 1
    %12 = vsyncpa %s11, 0
    loop: start=0, step=1, limit=4
    $region2: #{tpu_custom_call.1} parent=1 // loop_pre_header
      _
    $region3: #{tpu_custom_call.1} parent=1 // loop_header
      %s14 = sphi 0, %s18
      %p15 = scmp.ge.s32.totalorder %s14, 4
      %s22 = sphi 0, %s22
      %s24 = sphi 0, %s22
      %s25 = sphi 0, %s24
      %s39 = sphi 0, %s25
      %s43 = sphi 0, %s43
      %s45 = sphi 0, %s43
      %s46 = sphi 0, %s45
      %s60 = sphi 0, %s46
      %s66 = sphi 0, %s68
      %s69 = sphi 0, %s66
      %s70 = sphi 0, %s69
      %s86 = sphi 0, %s70
      %s92 = sphi 0, %s94
      %s95 = sphi 0, %s92
      %s96 = sphi 0, %s95
      %s112 = sphi 0, %s96
    $region4: #{tpu_custom_call.1} parent=1 // loop_header_branch
      %17 = sbr.rel (%p15) target = $region8
    $region5: #{tpu_custom_call.1} parent=1 // loop_body
      %s19 = ssub.s32 %s14, 1
      %s20 = ssub.s32 %s14, 2
      %s21 = sadd.s32 %s14, 1
      %s23 = sadd.s32 %s22, 1
      %p26 = scmp.eq.s32.totalorder %s14, 1
      %p27 = scmp.ne.s32.totalorder %s22, %s24
      %p28 = scmp.eq.s32.totalorder %s14, 0
      %p29 = por %p27, %p28
      %p30 = scmp.ne.s32.totalorder %s22, %s24
      %p31 = scmp.eq.s32.totalorder %s19, 1
      %p32 = por %p30, %p31
      %p33 = scmp.ne.s32.totalorder %s24, %s25
      %p34 = scmp.eq.s32.totalorder %s19, 0
      %p35 = por %p33, %p34
      %p36 = scmp.ne.s32.totalorder %s24, %s25
      %p37 = scmp.eq.s32.totalorder %s20, 1
      %p38 = por %p36, %p37
      %p40 = scmp.ne.s32.totalorder %s25, %s39
      %p41 = scmp.eq.s32.totalorder %s20, 0
      %p42 = por %p40, %p41
      %s44 = sadd.s32 %s43, 1
      %p47 = scmp.eq.s32.totalorder %s14, 1
      %p48 = scmp.ne.s32.totalorder %s43, %s45
      %p49 = scmp.eq.s32.totalorder %s14, 0
      %p50 = por %p48, %p49
      %p51 = scmp.ne.s32.totalorder %s43, %s45
      %p52 = scmp.eq.s32.totalorder %s19, 1
      %p53 = por %p51, %p52
      %p54 = scmp.ne.s32.totalorder %s45, %s46
      %p55 = scmp.eq.s32.totalorder %s19, 0
      %p56 = por %p54, %p55
      %p57 = scmp.ne.s32.totalorder %s45, %s46
      %p58 = scmp.eq.s32.totalorder %s20, 1
      %p59 = por %p57, %p58
      %p61 = scmp.ne.s32.totalorder %s46, %s60
      %p62 = scmp.eq.s32.totalorder %s20, 0
      %p63 = por %p61, %p62
      %s64 = ssub.s32 %s14, %s21
      %p65 = scmp.eq.s32.totalorder %s64, 0
      %s67 = sadd.s32 %s66, 1
      %s68 = scalar_select %p65, %s66, %s67
      %p71 = pneg %p65
      %p72 = scmp.eq.s32.totalorder %s14, 1
      %p73 = por %p71, %p72
      %p74 = scmp.ne.s32.totalorder %s66, %s69
      %p75 = scmp.eq.s32.totalorder %s14, 0
      %p76 = por %p74, %p75
      %p77 = scmp.ne.s32.totalorder %s66, %s69
      %p78 = scmp.eq.s32.totalorder %s19, 1
      %p79 = por %p77, %p78
      %p80 = scmp.ne.s32.totalorder %s69, %s70
      %p81 = scmp.eq.s32.totalorder %s19, 0
      %p82 = por %p80, %p81
      %p83 = scmp.ne.s32.totalorder %s69, %s70
      %p84 = scmp.eq.s32.totalorder %s20, 1
      %p85 = por %p83, %p84
      %p87 = scmp.ne.s32.totalorder %s70, %s86
      %p88 = scmp.eq.s32.totalorder %s20, 0
      %p89 = por %p87, %p88
      %s90 = ssub.s32 %s14, %s21
      %p91 = scmp.eq.s32.totalorder %s90, 0
      %s93 = sadd.s32 %s92, 1
      %s94 = scalar_select %p91, %s92, %s93
      %p97 = pneg %p91
      %p98 = scmp.eq.s32.totalorder %s14, 1
      %p99 = por %p97, %p98
      %p100 = scmp.ne.s32.totalorder %s92, %s95
      %p101 = scmp.eq.s32.totalorder %s14, 0
      %p102 = por %p100, %p101
      %p103 = scmp.ne.s32.totalorder %s92, %s95
      %p104 = scmp.eq.s32.totalorder %s19, 1
      %p105 = por %p103, %p104
      %p106 = scmp.ne.s32.totalorder %s95, %s96
      %p107 = scmp.eq.s32.totalorder %s19, 0
      %p108 = por %p106, %p107
      %p109 = scmp.ne.s32.totalorder %s95, %s96
      %p110 = scmp.eq.s32.totalorder %s20, 1
      %p111 = por %p109, %p110
      %p113 = scmp.ne.s32.totalorder %s96, %s112
      %p114 = scmp.eq.s32.totalorder %s20, 0
      %p115 = por %p113, %p114
      %p116 = scmp.le.s32.totalorder 1, %s14
      %p117 = scmp.lt.s32.totalorder %s14, 3
      %p118 = pnand %p116, %p117
      %p119 = pneg %p118
      // Predicated region
      $region9: #{tpu_custom_call.1} parent=5 // pred_check
        _
      $region10: #{tpu_custom_call.1} parent=5 // pred_check_branch
        %121 = sbr.rel (%p118) target = $region12
      $region11: #{tpu_custom_call.1} parent=5 // pred_region
        %s122 = ssub.s32 %s14, 1
        // Predicated region
        $region13: #{tpu_custom_call.1} parent=11 // pred_check
          %p123 = pneg %p35
        $region14: #{tpu_custom_call.1} parent=11 // pred_check_branch
          %125 = sbr.rel (%p123) target = $region16
        $region15: #{tpu_custom_call.1} parent=11 // pred_region
          %127 = vsyncadd [#allocation3], 0
          %s128 = sshll.u32 %s0, 4
          %s129 = int_to_ptr.hbm [resolvable:$true] %s128
          %s130 = sshll.u32 [#allocation2], 4
          %s131 = int_to_ptr.vmem [resolvable:$true] %s130
          %136 = dma.hbm_to_vmem [thread:$0]  %s129, 512, %s131, [#allocation3], 128, 128, 8
        $region16: #{tpu_custom_call.1} parent=11 // pred_fallthru
          _
        // Predicated region
        $region17: #{tpu_custom_call.1} parent=11 // pred_check
          %p137 = pneg %p56
        $region18: #{tpu_custom_call.1} parent=11 // pred_check_branch
          %139 = sbr.rel (%p137) target = $region20
        $region19: #{tpu_custom_call.1} parent=11 // pred_region
          %141 = vsyncadd [#allocation6], 0
          %s142 = sshll.u32 %s1, 4
          %s143 = int_to_ptr.hbm [resolvable:$true] %s142
          %s144 = sshll.u32 [#allocation5], 4
          %s145 = int_to_ptr.vmem [resolvable:$true] %s144
          %150 = dma.hbm_to_vmem [thread:$0]  %s143, 512, %s145, [#allocation6], 128, 128, 8
        $region20: #{tpu_custom_call.1} parent=11 // pred_fallthru
          _
      $region12: #{tpu_custom_call.1} parent=5 // pred_fallthru
        _
      %p151 = scmp.lt.s32.totalorder %s14, 2
      // Predicated region
      $region21: #{tpu_custom_call.1} parent=5 // pred_check
        %p152 = pneg %p151
      $region22: #{tpu_custom_call.1} parent=5 // pred_check_branch
        %154 = sbr.rel (%p152) target = $region24
      $region23: #{tpu_custom_call.1} parent=5 // pred_region
        // Predicated region
        $region25: #{tpu_custom_call.1} parent=23 // pred_check
          %p155 = pneg %p76
        $region26: #{tpu_custom_call.1} parent=23 // pred_check_branch
          %157 = sbr.rel (%p155) target = $region28
        $region27: #{tpu_custom_call.1} parent=23 // pred_region
          %s158 = sand.u32 %s14, 1
          %s159 = scalar_lea.sflag [#allocation3], %s158
          %s160 = sand.u32 %s66, 1
          %s161 = smul.addr %s160, 32
          %s162 = scalar_lea.vmem [#allocation7], %s161
          %s163 = smul.u32 4, %s14
          %165 = vsyncadd %s159, 0
          %s166 = smul.addr %s163, 8
          %s167 = scalar_lea.hbm %s2, %s166
          %s168 = sshll.u32 %s167, 4
          %s169 = int_to_ptr.hbm [resolvable:$true] %s168
          %s170 = sshll.u32 %s162, 4
          %s171 = int_to_ptr.vmem [resolvable:$true] %s170
          %176 = dma.hbm_to_vmem [thread:$0]  %s169, 512, %s171, %s159, 128, 128, 8
        $region28: #{tpu_custom_call.1} parent=23 // pred_fallthru
          _
      $region24: #{tpu_custom_call.1} parent=5 // pred_fallthru
        _
      %p177 = scmp.le.s32.totalorder 1, %s14
      %p178 = scmp.lt.s32.totalorder %s14, 3
      %p179 = pnand %p177, %p178
      %p180 = pneg %p179
      // Predicated region
      $region29: #{tpu_custom_call.1} parent=5 // pred_check
        _
      $region30: #{tpu_custom_call.1} parent=5 // pred_check_branch
        %182 = sbr.rel (%p179) target = $region32
      $region31: #{tpu_custom_call.1} parent=5 // pred_region
        %s183 = ssub.s32 %s14, 1
        // Predicated region
        $region33: #{tpu_custom_call.1} parent=31 // pred_check
          %p184 = pneg %p35
        $region34: #{tpu_custom_call.1} parent=31 // pred_check_branch
          %186 = sbr.rel (%p184) target = $region36
        $region35: #{tpu_custom_call.1} parent=31 // pred_region
          %188 = dma.done [#allocation3], 512
        $region36: #{tpu_custom_call.1} parent=31 // pred_fallthru
          _
        // Predicated region
        $region37: #{tpu_custom_call.1} parent=31 // pred_check
          %p189 = pneg %p56
        $region38: #{tpu_custom_call.1} parent=31 // pred_check_branch
          %191 = sbr.rel (%p189) target = $region40
        $region39: #{tpu_custom_call.1} parent=31 // pred_region
          %193 = dma.done [#allocation6], 512
        $region40: #{tpu_custom_call.1} parent=31 // pred_fallthru
          _
        %s194 = sand.u32 %s19, 1
        %s195 = scalar_lea.sflag [#allocation3], %s194
        %s196 = sand.u32 %s69, 1
        %s197 = smul.addr %s196, 32
        %s198 = scalar_lea.vmem [#allocation7], %s197
        // Predicated region
        $region41: #{tpu_custom_call.1} parent=31 // pred_check
          %p199 = pneg %p82
        $region42: #{tpu_custom_call.1} parent=31 // pred_check_branch
          %201 = sbr.rel (%p199) target = $region44
        $region43: #{tpu_custom_call.1} parent=31 // pred_region
          %203 = dma.done %s195, 512
        $region44: #{tpu_custom_call.1} parent=31 // pred_fallthru
          _
        %p204 = pneg %p35
        %p205 = pneg %p32
        %p206 = pneg %p56
        %p207 = pneg %p53
        %s208 = sand.u32 %s19, 1
        %s209 = scalar_lea.sflag [#allocation3], %s208
        %s210 = sand.u32 %s69, 1
        %s211 = smul.addr %s210, 32
        %s212 = scalar_lea.vmem [#allocation7], %s211
        %p213 = pneg %p82
        %p214 = pneg %p79
        %p215 = pneg %p108
        %p216 = pneg %p105
        %s217 = sand.u32 %s95, 1
        %s218 = scalar_lea.sflag [#allocation4], %s217
        %s219 = sand.u32 %s95, 1
        %s220 = smul.addr %s219, 32
        %s221 = scalar_lea.vmem [#allocation8], %s220
        %s222 = smul.u32 4, %s19
        %s223 = smul.u32 4, %s19
        %v224 = vld [vmem:[%s198] sm:$0xff]
        %v225 = vld [vmem:[%s198 + $0x8] sm:$0xff]
        %v226 = vld [vmem:[%s198 + $0x10] sm:$0xff]
        %v227 = vld [vmem:[%s198 + $0x18] sm:$0xff]
        %228 = vrot.lane.b32.xlu0 %v224, 127
        %v229 = vpop.permute.xlu0 %228
        %230 = vrot.lane.b32.xlu0 %v225, 127
        %v231 = vpop.permute.xlu0 %230
        %232 = vrot.lane.b32.xlu0 %v226, 127
        %v233 = vpop.permute.xlu0 %232
        %234 = vrot.lane.b32.xlu0 %v227, 127
        %v235 = vpop.permute.xlu0 %234
        %236 = vrot.lane.b32.xlu0 %v224, 1
        %v237 = vpop.permute.xlu0 %236
        %238 = vrot.lane.b32.xlu0 %v225, 1
        %v239 = vpop.permute.xlu0 %238
        %240 = vrot.lane.b32.xlu0 %v226, 1
        %v241 = vpop.permute.xlu0 %240
        %242 = vrot.lane.b32.xlu0 %v227, 1
        %v243 = vpop.permute.xlu0 %242
        %v244 = vlaneseq
        %v245 = vand.u32 %v244, 127
        %vm246 = vcmp.lt.s32.totalorder %v245, 0
        %v247 = vsub.s32 0, %v245
        %v248 = vsel %vm246, %v247, %v245
        %v249 = vshrl.u32 %v248, 1
        %v250 = vand.u32 %v248, 1
        %v251 = vsub.s32 0, %v250
        %v252 = vsel %vm246, %v251, %v250
        %vm253 = vcmp.ne.s32.totalorder %v252, 0
        %vm254 = vcmp.lt.s32.totalorder %v252, 0
        %vm255 = vmand %vm254, %vm253
        %v256 = vadd.s32 %v252, 2
        %v257 = vsel %vm255, %v256, %v252
        %vm258 = vcmp.eq.s32.totalorder %v257, 0
        %v259 = vsel %vm258, %v229, %v237
        %v260 = vsel %vm258, %v231, %v239
        %v261 = vsel %vm258, %v233, %v241
        %v262 = vsel %vm258, %v235, %v243
        %v263 = vld [vmem:[#allocation2] sm:$0xff]
        %v264 = vld [vmem:[#allocation2 + $0x8] sm:$0xff]
        %v265 = vld [vmem:[#allocation2 + $0x10] sm:$0xff]
        %v266 = vld [vmem:[#allocation2 + $0x18] sm:$0xff]
        %v267 = vmul.f32 %v263, %v224
        %v268 = vmul.f32 %v264, %v225
        %v269 = vmul.f32 %v265, %v226
        %v270 = vmul.f32 %v266, %v227
        %v271 = vld [vmem:[#allocation5] sm:$0xff]
        %v272 = vld [vmem:[#allocation5 + $0x8] sm:$0xff]
        %v273 = vld [vmem:[#allocation5 + $0x10] sm:$0xff]
        %v274 = vld [vmem:[#allocation5 + $0x18] sm:$0xff]
        %v275 = vmul.f32 %v271, %v259
        %v276 = vmul.f32 %v272, %v260
        %v277 = vmul.f32 %v273, %v261
        %v278 = vmul.f32 %v274, %v262
        %v279 = vadd.f32 %v267, %v275
        %v280 = vadd.f32 %v268, %v276
        %v281 = vadd.f32 %v269, %v277
        %v282 = vadd.f32 %v270, %v278
        %283 = vst [vmem:[%s221] sm:$0xff] %v279
        %284 = vst [vmem:[%s221 + $0x8] sm:$0xff] %v280
        %285 = vst [vmem:[%s221 + $0x10] sm:$0xff] %v281
        %286 = vst [vmem:[%s221 + $0x18] sm:$0xff] %v282
        %s287 = sand.u32 %s95, 1
        %s288 = scalar_lea.sflag [#allocation4], %s287
        %s289 = sand.u32 %s95, 1
        %s290 = smul.addr %s289, 32
        %s291 = scalar_lea.vmem [#allocation8], %s290
        // Predicated region
        $region45: #{tpu_custom_call.1} parent=31 // pred_check
          %p292 = pneg %p105
        $region46: #{tpu_custom_call.1} parent=31 // pred_check_branch
          %294 = sbr.rel (%p292) target = $region48
        $region47: #{tpu_custom_call.1} parent=31 // pred_region
          %s295 = smul.u32 4, %s19
          %297 = vsyncadd %s288, 0
          %s298 = smul.addr %s295, 8
          %s299 = scalar_lea.hbm %s3, %s298
          %s300 = sshll.u32 %s291, 4
          %s301 = int_to_ptr.vmem [resolvable:$true] %s300
          %s302 = sshll.u32 %s299, 4
          %s303 = int_to_ptr.hbm [resolvable:$true] %s302
          %308 = dma.vmem_to_hbm [thread:$0]  %s301, 512, %s303, %s288, 128, 128, 8
        $region48: #{tpu_custom_call.1} parent=31 // pred_fallthru
          _
      $region32: #{tpu_custom_call.1} parent=5 // pred_fallthru
        _
      %p309 = scmp.le.s32.totalorder 2, %s14
      // Predicated region
      $region49: #{tpu_custom_call.1} parent=5 // pred_check
        %p310 = pneg %p309
      $region50: #{tpu_custom_call.1} parent=5 // pred_check_branch
        %312 = sbr.rel (%p310) target = $region52
      $region51: #{tpu_custom_call.1} parent=5 // pred_region
        %s313 = ssub.s32 %s14, 2
        // Predicated region
        $region53: #{tpu_custom_call.1} parent=51 // pred_check
          %p314 = pneg %p111
        $region54: #{tpu_custom_call.1} parent=51 // pred_check_branch
          %316 = sbr.rel (%p314) target = $region56
        $region55: #{tpu_custom_call.1} parent=51 // pred_region
          %s317 = sand.u32 %s96, 1
          %s318 = scalar_lea.sflag [#allocation4], %s317
          %s319 = sand.u32 %s96, 1
          %s320 = smul.addr %s319, 32
          %s321 = scalar_lea.vmem [#allocation8], %s320
          %323 = dma.done %s318, 512
        $region56: #{tpu_custom_call.1} parent=51 // pred_fallthru
          _
      $region52: #{tpu_custom_call.1} parent=5 // pred_fallthru
        _
    $region6: #{tpu_custom_call.1} parent=1 // loop_footer
      %s18 = sadd.s32 1, %s14
    $region7: #{tpu_custom_call.1} parent=1 // loop_footer_branch
      %13 = sbr.rel target = $region3
    $region8: #{tpu_custom_call.1} parent=1 // loop_exit
      _
    %324 = vsyncpa [#allocation3], 1
    %s325 = scalar_lea.sflag [#allocation3], 1
    %326 = vsyncpa %s325, 1
    %327 = vsyncpa [#allocation6], 1
    %328 = vsyncpa [#allocation4], 1
    %s329 = scalar_lea.sflag [#allocation4], 1
    %330 = vsyncpa %s329, 1

</llo_original>
